<compile_context>
chip_gen: v7x
topology: tpu7x:2x2x1
jax: 0.10.0
libtpu: 0.0.40
codegen_flags: <defaults>
</compile_context>

<pallas_src>
import jax
import jax.numpy as jnp
from jax.experimental import pallas as pl
from jax.experimental.pallas import tpu as pltpu


LANES = 128
VMEM_BLOCK_BUDGET = 36 * 1024 * 1024     # conservative block footprint (fits v7x)
VMEM_LIMIT_BYTES = 48 * 1024 * 1024      # <= v7x 64 MiB physical, > default scoped
EDGE_ROW_TILE_MAX = 1024                 # (1024,128) f32 = 512 KiB per operand/step


def _round_up(x, m):
    return ((x + m - 1) // m) * m


# ---------------------------------------------------------------------------
# Kernel 1: fused GCN layer, full-row contraction (primary path)
#   one grid step = one row slab of relu(A @ (X @ W) + b)
# ---------------------------------------------------------------------------
def gcn_layer_full_kernel(a_ref, x_ref, w_ref, b_ref, o_ref):
    # feature transform on resident X/W (recomputed per row tile; F,C are tiny)
    h = jnp.dot(x_ref[...], w_ref[...], preferred_element_type=jnp.float32)
    # full contraction over all source nodes in one MXU pass
    acc = jnp.dot(a_ref[...], h.astype(a_ref.dtype),
                  preferred_element_type=jnp.float32)
    # bias + ReLU epilogue on the f32 accumulator (v5e-safe), cast on store
    o_ref[...] = jnp.maximum(acc + b_ref[...], 0.0).astype(o_ref.dtype)


def _fits_full(rt, n_pad, f, c):
    fp = (2 * rt * n_pad * 2          # A slab, bf16, double buffered
          + 2 * n_pad * f * 2         # resident X (bf16), conservative x2
          + 2 * f * c * 2             # resident W
          + 2 * c * 4                 # bias
          + 2 * rt * c * 2            # output tile
          + n_pad * c * 6)            # in-kernel H intermediate (f32 + bf16)
    return fp <= VMEM_BLOCK_BUDGET


def _choose_full_row_tile(n_pad, f, c):
    best_single = None
    for rt in (4096, 2048, 1024, 512, 256, 128):
        if rt > n_pad or n_pad % rt:
            continue
        if not _fits_full(rt, n_pad, f, c):
            continue
        if rt < n_pad:
            return rt                 # >=2 row tiles keeps both v7x TCs busy
        best_single = rt
    return best_single


def gcn_layer_full(a_p, x_p, w, b, row_tile, out_dtype=jnp.bfloat16):
    n_pad = a_p.shape[0]
    f = x_p.shape[1]
    c = w.shape[1]
    cost = pl.CostEstimate(
        flops=2 * n_pad * n_pad * c
        + 2 * n_pad * f * c * (n_pad // row_tile),
        transcendentals=0,
        bytes_accessed=(a_p.size * 2 + x_p.size * 2 + w.size * 2
                        + n_pad * c * jnp.dtype(out_dtype).itemsize),
    )
    return pl.pallas_call(
        gcn_layer_full_kernel,
        out_shape=jax.ShapeDtypeStruct((n_pad, c), out_dtype),
        grid=(n_pad // row_tile,),
        in_specs=[
            pl.BlockSpec((row_tile, n_pad), lambda i: (i, 0)),   # A slab (streams)
            pl.BlockSpec((n_pad, f), lambda i: (0, 0)),          # X resident
            pl.BlockSpec((f, c), lambda i: (0, 0)),              # W resident
            pl.BlockSpec((1, c), lambda i: (0, 0)),              # bias resident
        ],
        out_specs=pl.BlockSpec((row_tile, c), lambda i: (i, 0)),
        compiler_params=pltpu.CompilerParams(
            dimension_semantics=("parallel",),
            vmem_limit_bytes=VMEM_LIMIT_BYTES,
        ),
        cost_estimate=cost,
    )(a_p, x_p, w.astype(jnp.bfloat16), b.reshape(1, c).astype(jnp.float32))


# ---------------------------------------------------------------------------
# Fallback path for very large graphs: hoisted linear + k-tiled aggregate
# ---------------------------------------------------------------------------
def linear_kernel(x_ref, w_ref, o_ref):
    o_ref[...] = jnp.dot(x_ref[...], w_ref[...],
                         preferred_element_type=jnp.float32).astype(o_ref.dtype)


def linear(x, w, out_dtype, row_tile):
    n_pad, f = x.shape
    c = w.shape[1]
    return pl.pallas_call(
        linear_kernel,
        out_shape=jax.ShapeDtypeStruct((n_pad, c), out_dtype),
        grid=(n_pad // row_tile,),
        in_specs=[pl.BlockSpec((row_tile, f), lambda i: (i, 0)),
                  pl.BlockSpec((f, c), lambda i: (0, 0))],
        out_specs=pl.BlockSpec((row_tile, c), lambda i: (i, 0)),
        compiler_params=pltpu.CompilerParams(
            dimension_semantics=("parallel",),
            vmem_limit_bytes=VMEM_LIMIT_BYTES),
    )(x, w)


def aggregate_ktiled_kernel(a_ref, h_ref, b_ref, o_ref, acc_ref):
    k = pl.program_id(1)

    @pl.when(k == 0)
    def _():
        acc_ref[...] = jnp.zeros_like(acc_ref)

    acc_ref[...] += jnp.dot(a_ref[...], h_ref[...],
                            preferred_element_type=jnp.float32)

    @pl.when(k == pl.num_programs(1) - 1)
    def _():
        o_ref[...] = jnp.maximum(acc_ref[...] + b_ref[...], 0.0).astype(o_ref.dtype)


def aggregate_ktiled(a, h, b, out_dtype):
    n_pad = a.shape[0]
    c = h.shape[1]
    rt = 512 if n_pad % 512 == 0 else 256
    tk = 256
    for cand in (8192, 4096, 2048, 1024, 512):   # multi-MiB A blocks per step
        if n_pad % cand:
            continue
        fp = (2 * rt * cand * 2 + 2 * cand * c * 2
              + rt * c * 4 + 2 * rt * c * 2 + 2 * c * 4)
        if fp <= VMEM_BLOCK_BUDGET:
            tk = cand
            break
    return pl.pallas_call(
        aggregate_ktiled_kernel,
        out_shape=jax.ShapeDtypeStruct((n_pad, c), out_dtype),
        grid=(n_pad // rt, n_pad // tk),
        in_specs=[
            pl.BlockSpec((rt, tk), lambda i, k: (i, k)),    # A tile
            pl.BlockSpec((tk, c), lambda i, k: (k, 0)),     # H k-slab
            pl.BlockSpec((1, c), lambda i, k: (0, 0)),      # bias
        ],
        out_specs=pl.BlockSpec((rt, c), lambda i, k: (i, 0)),
        scratch_shapes=[pltpu.VMEM((rt, c), jnp.float32)],
        compiler_params=pltpu.CompilerParams(
            dimension_semantics=("parallel", "arbitrary"),
            vmem_limit_bytes=VMEM_LIMIT_BYTES),
    )(a, h, b.reshape(1, c).astype(jnp.float32))


def gcn_layer(a_p, x_p, w_bf16, b):
    """relu(A_norm @ (X @ W) + b) with adaptive tiling."""
    n_pad = a_p.shape[0]
    f = x_p.shape[1]
    c = w_bf16.shape[1]
    rt = _choose_full_row_tile(n_pad, f, c)
    if rt is not None:
        return gcn_layer_full(a_p, x_p, w_bf16, b, rt)
    # very large graphs: hoisted transform + k-tiled streaming aggregate
    lin_rt = 256
    for cand in (4096, 2048, 1024, 512, 256):
        if n_pad % cand == 0 and (2 * cand * f * 2 + 2 * cand * c * 2) <= VMEM_BLOCK_BUDGET:
            lin_rt = cand
            break
    h = linear(x_p, w_bf16, jnp.bfloat16, lin_rt)
    return aggregate_ktiled(a_p, h, b, jnp.bfloat16)


# ---------------------------------------------------------------------------
# Kernel 2: edge scorer  sigmoid(p_src + p_dst + b), lane-dense tiles
# ---------------------------------------------------------------------------
def edge_sigmoid_kernel(ps_ref, pd_ref, b_ref, o_ref):
    o_ref[...] = jax.nn.sigmoid(ps_ref[...] + pd_ref[...] + b_ref[0, 0])


def edge_sigmoid(ps, pd, b, row_tile):
    r = ps.shape[0]
    return pl.pallas_call(
        edge_sigmoid_kernel,
        out_shape=jax.ShapeDtypeStruct((r, LANES), jnp.float32),
        grid=(r // row_tile,),
        in_specs=[
            pl.BlockSpec((row_tile, LANES), lambda i: (i, 0)),
            pl.BlockSpec((row_tile, LANES), lambda i: (i, 0)),
            pl.BlockSpec(memory_space=pltpu.MemorySpace.SMEM),
        ],
        out_specs=pl.BlockSpec((row_tile, LANES), lambda i: (i, 0)),
        compiler_params=pltpu.CompilerParams(dimension_semantics=("parallel",)),
    )(ps, pd, b.reshape(1, 1).astype(jnp.float32))


# ---------------------------------------------------------------------------
# Plain-JAX glue
# ---------------------------------------------------------------------------
def build_norm_adj_padded(edge_index, num_nodes, n_pad):
    """Dense GCN normalization D^-1/2 (A + remaining self loops) D^-1/2,
    built directly at padded size and cast to bf16 in one fused pass.
    Depends only on edge_index, so it can be computed once and reused.
    """
    src, dst = edge_index[0], edge_index[1]
    a = jnp.zeros((n_pad, n_pad), jnp.float32)
    a = a.at[dst, src].add(1.0)                       # message src -> dst
    idx = jnp.arange(num_nodes)
    diag = a[idx, idx]
    # add_remaining_self_loops: keep existing self-loop weight, add 1 if missing
    a = a.at[idx, idx].set(jnp.where(diag > 0, diag, 1.0))
    deg = a.sum(axis=1)                               # padded rows stay 0
    d_inv_sqrt = jnp.where(deg > 0, jax.lax.rsqrt(deg), 0.0)
    return (d_inv_sqrt[:, None] * a * d_inv_sqrt[None, :]).astype(jnp.bfloat16)


def gcn_no_edge_weights_forward(params, x, edge_index, a_norm_padded=None):
    n, f_in = x.shape
    hidden = params["w2"].shape[1]
    e = edge_index.shape[1]

    n_pad = _round_up(max(n, 256), 256)
    if a_norm_padded is None:
        a_norm_padded = build_norm_adj_padded(edge_index, n, n_pad)

    x_p = jnp.zeros((n_pad, f_in), jnp.bfloat16).at[:n, :].set(
        x.astype(jnp.bfloat16))

    w1 = params["w1"].astype(jnp.bfloat16)
    w2 = params["w2"].astype(jnp.bfloat16)

    # layer 1: relu(A_norm @ (X @ W1) + b1)
    h1 = gcn_layer(a_norm_padded, x_p, w1, params["b1"])
    # TODO(synk): Dropout(0.5) -> identity (eval mode).
    # layer 2: relu(A_norm @ (H1 @ W2) + b2)
    h2 = gcn_layer(a_norm_padded, h1, w2, params["b2"])

    # edge scorer (exact algebraic refactor of nn.Linear on [h_src, h_dst]):
    #   sigmoid([h_src, h_dst] @ W.T + b)
    #     == sigmoid((H2 @ w_src)[src] + (H2 @ w_dst)[dst] + b)
    lin_w = params["lin_w"]                                      # (1, 2H)
    w_pair = jnp.stack([lin_w[0, :hidden], lin_w[0, hidden:]], axis=1)  # (H, 2)
    # tiny (n_pad, H) @ (H, 2): plain XLA (avoids a 2/128-lane masked store kernel)
    proj = jnp.dot(h2.astype(jnp.float32), w_pair)               # (n_pad, 2)

    src, dst = edge_index[0], edge_index[1]
    p_src = proj[src, 0]                                         # (E,)
    p_dst = proj[dst, 1]                                         # (E,)

    rows = -(-e // LANES)
    row_tile = min(EDGE_ROW_TILE_MAX, _round_up(rows, 8))
    rows_pad = _round_up(rows, row_tile)
    e_pad = rows_pad * LANES
    ps = jnp.zeros((e_pad,), jnp.float32).at[:e].set(p_src).reshape(rows_pad, LANES)
    pd = jnp.zeros((e_pad,), jnp.float32).at[:e].set(p_dst).reshape(rows_pad, LANES)

    scores = edge_sigmoid(ps, pd, params["lin_b"], row_tile)     # (rows_pad, 128)
    return scores.reshape(-1)[:e]                                # (E,)


def init_params(key, input_channels, hidden_channels):
    k1, k2, k3 = jax.random.split(key, 3)
    scale1 = 1.0 / jnp.sqrt(input_channels)
    scale2 = 1.0 / jnp.sqrt(hidden_channels)
    scale3 = 1.0 / jnp.sqrt(2 * hidden_channels)
    return {
        "w1": jax.random.uniform(k1, (input_channels, hidden_channels),
                                 jnp.float32, -scale1, scale1),
        "b1": jnp.zeros((hidden_channels,), jnp.float32),
        "w2": jax.random.uniform(k2, (hidden_channels, hidden_channels),
                                 jnp.float32, -scale2, scale2),
        "b2": jnp.zeros((hidden_channels,), jnp.float32),
        "lin_w": jax.random.uniform(k3, (1, 2 * hidden_channels),
                                    jnp.float32, -scale3, scale3),
        "lin_b": jnp.zeros((1,), jnp.float32),
    }


# ---------------------------------------------------------------------------
# Demo
# ---------------------------------------------------------------------------
if __name__ == "__main__":
    key = jax.random.PRNGKey(0)
    k_x, k_e, k_p = jax.random.split(key, 3)

    num_nodes = 16
    input_channels = 8
    hidden_channels = 32
    num_edges = 32

    x = jax.random.normal(k_x, (num_nodes, input_channels), jnp.float32)
    edge_index = jax.random.randint(k_e, (2, num_edges), 0, num_nodes,
                                    dtype=jnp.int32)

    params = init_params(k_p, input_channels, hidden_channels)

    out = gcn_no_edge_weights_forward(params, x, edge_index)
    out = jax.block_until_ready(out)

    assert out.shape == (num_edges,)
    assert bool(jnp.all(jnp.isfinite(out)))
    assert bool(jnp.all((out >= 0.0) & (out <= 1.0)))

    print("KERNEL_OK")
</pallas_src>

<mosaic_0001>
module attributes {stable_mosaic.version = 11 : i64} {
  func.func @gcn_layer_full_kernel(%arg0: i32, %arg1: memref<128x256xbf16, #tpu.memory_space<vmem>>, %arg2: memref<256x8xbf16, #tpu.memory_space<vmem>>, %arg3: memref<8x32xbf16, #tpu.memory_space<vmem>>, %arg4: memref<1x32xf32, #tpu.memory_space<vmem>>, %arg5: memref<128x32xbf16, #tpu.memory_space<vmem>>) attributes {dimension_semantics = [#tpu.dimension_semantics<parallel>], iteration_bounds = array<i64: 2>, scalar_prefetch = 0 : i64, scratch_operands = 0 : i64, tpu.core_type = #tpu.core_type<tc>, window_params = [{transform_indices = @transform_0, window_bounds = array<i64: 128, 256>}, {pipeline_mode = #tpu.pipeline_mode<synchronous>, transform_indices = @transform_1, window_bounds = array<i64: 256, 8>}, {pipeline_mode = #tpu.pipeline_mode<synchronous>, transform_indices = @transform_2, window_bounds = array<i64: 8, 32>}, {pipeline_mode = #tpu.pipeline_mode<synchronous>, transform_indices = @transform_3, window_bounds = array<i64: 1, 32>}, {transform_indices = @transform_4, window_bounds = array<i64: 128, 32>}]} {
    %c0 = arith.constant 0 : index
    %c0_0 = arith.constant 0 : index
    %0 = vector.load %arg2[%c0, %c0_0] : memref<256x8xbf16, #tpu.memory_space<vmem>>, vector<256x8xbf16>
    %c0_1 = arith.constant 0 : index
    %c0_2 = arith.constant 0 : index
    %1 = vector.load %arg3[%c0_1, %c0_2] : memref<8x32xbf16, #tpu.memory_space<vmem>>, vector<8x32xbf16>
    %cst = arith.constant dense<0.000000e+00> : vector<256x32xf32>
    %2 = tpu.matmul %0, %1, %cst {dimension_numbers = #tpu.dot_dimension_numbers<[1], [0], [0], [1], [0, 0, 1, 1], [], []>} : vector<256x8xbf16>, vector<8x32xbf16>, vector<256x32xf32> -> vector<256x32xf32>
    %c0_3 = arith.constant 0 : index
    %c0_4 = arith.constant 0 : index
    %3 = vector.load %arg1[%c0_3, %c0_4] : memref<128x256xbf16, #tpu.memory_space<vmem>>, vector<128x256xbf16>
    %4 = arith.truncf %2 : vector<256x32xf32> to vector<256x32xbf16>
    %cst_5 = arith.constant dense<0.000000e+00> : vector<128x32xf32>
    %5 = tpu.matmul %3, %4, %cst_5 {dimension_numbers = #tpu.dot_dimension_numbers<[1], [0], [0], [1], [0, 0, 1, 1], [], []>} : vector<128x256xbf16>, vector<256x32xbf16>, vector<128x32xf32> -> vector<128x32xf32>
    %c0_6 = arith.constant 0 : index
    %c0_7 = arith.constant 0 : index
    %6 = vector.load %arg4[%c0_6, %c0_7] : memref<1x32xf32, #tpu.memory_space<vmem>>, vector<1x32xf32>
    %7 = vector.broadcast %6 : vector<1x32xf32> to vector<128x32xf32>
    %8 = arith.addf %5, %7 : vector<128x32xf32>
    %cst_8 = arith.constant 0.000000e+00 : f32
    %9 = vector.broadcast %cst_8 : f32 to vector<128x32xf32>
    %10 = arith.maximumf %8, %9 : vector<128x32xf32>
    %11 = arith.truncf %10 : vector<128x32xf32> to vector<128x32xbf16>
    %c0_9 = arith.constant 0 : index
    %c0_10 = arith.constant 0 : index
    %12 = vector.load %arg5[%c0_9, %c0_10] : memref<128x32xbf16, #tpu.memory_space<vmem>>, vector<128x32xbf16>
    tpu.vector_store %arg5[%c0_9, %c0_10], %11 {strides = array<i32>} : memref<128x32xbf16, #tpu.memory_space<vmem>>, vector<128x32xbf16>,
    return
  }
  func.func @transform_0(%arg0: i32) -> (i32, i32) {
    %c0_i32 = arith.constant 0 : i32
    %c0_i32_0 = arith.constant 0 : i32
    return %arg0, %c0_i32 : i32, i32
  }
  func.func @transform_1(%arg0: i32) -> (i32, i32) {
    %c0_i32 = arith.constant 0 : i32
    %c0_i32_0 = arith.constant 0 : i32
    %c0_i32_1 = arith.constant 0 : i32
    return %c0_i32, %c0_i32_0 : i32, i32
  }
  func.func @transform_2(%arg0: i32) -> (i32, i32) {
    %c0_i32 = arith.constant 0 : i32
    %c0_i32_0 = arith.constant 0 : i32
    %c0_i32_1 = arith.constant 0 : i32
    return %c0_i32, %c0_i32_0 : i32, i32
  }
  func.func @transform_3(%arg0: i32) -> (i32, i32) {
    %c0_i32 = arith.constant 0 : i32
    %c0_i32_0 = arith.constant 0 : i32
    %c0_i32_1 = arith.constant 0 : i32
    return %c0_i32, %c0_i32_0 : i32, i32
  }
  func.func @transform_4(%arg0: i32) -> (i32, i32) {
    %c0_i32 = arith.constant 0 : i32
    %c0_i32_0 = arith.constant 0 : i32
    return %arg0, %c0_i32 : i32, i32
  }
}

</mosaic_0001>

<llo_original>
// kernel: tpu_custom_call.1
$region0: #{tpu_custom_call.1}
  #allocation0 [shape = 'u32[]', space=smem, size = 0x4, offset = 0x4, fixed_abs, tag = 'smem constant byte address 0x4 - core index']
  #allocation1 [shape = 'u32[144,128]{1,0:T(1,128)}', space=vmem, size = 0x12000, scoped, tag = 'internal scratch']
  %s0 = inlined_call_operand.hbm [shape: bf16[256,256], index: 0, kind: input, shape index: {}]
  %s1 = inlined_call_operand.vmem [shape: bf16[256,8], index: 1, kind: input, shape index: {}]
  %s2 = inlined_call_operand.vmem [shape: bf16[8,32], index: 2, kind: input, shape index: {}]
  %s3 = inlined_call_operand.vmem [shape: f32[1,32], index: 3, kind: input, shape index: {}]
  %s4 = inlined_call_operand.vmem [shape: bf16[256,32], index: 4, kind: output, shape index: {}]
  %s5 = sld [smem:[#allocation0]]
  $region53: #{tpu_custom_call.1} parent=0
    _
  %s7 = ssub.s32 1, %s5
  %s8 = scalar_select 0, %s7, %s5
  $region1: #{tpu_custom_call.1} parent=0
    #allocation2 [shape = 'u8[131072]{0}', space=vmem, size = 0x20000, scoped, tag = 'input window, operand 0']
    #allocation3 [shape = 's32[2]{0}', space=sflag, size = 0x8, scoped, tag = 'scoped memory for tpu_custom_call.1']
    %9 = vsyncpa [#allocation3], 0
    %s10 = scalar_lea.sflag [#allocation3], 1
    %11 = vsyncpa %s10, 0
    loop: start=0, step=1, limit=4
    $region2: #{tpu_custom_call.1} parent=1 // loop_pre_header
      _
    $region3: #{tpu_custom_call.1} parent=1 // loop_header
      %s13 = sphi 0, %s17
      %p14 = scmp.ge.s32.totalorder %s13, 4
      %s23 = sphi 0, %s25
      %s26 = sphi 0, %s23
      %s27 = sphi 0, %s26
      %s43 = sphi 0, %s27
      %s47 = sphi 0, %s47
      %s49 = sphi 0, %s47
      %s50 = sphi 0, %s49
      %s64 = sphi 0, %s50
      %s68 = sphi 0, %s68
      %s70 = sphi 0, %s68
      %s71 = sphi 0, %s70
      %s85 = sphi 0, %s71
      %s89 = sphi 0, %s89
      %s91 = sphi 0, %s89
      %s92 = sphi 0, %s91
      %s106 = sphi 0, %s92
      %s112 = sphi 0, %s114
      %s115 = sphi 0, %s112
      %s116 = sphi 0, %s115
      %s132 = sphi 0, %s116
    $region4: #{tpu_custom_call.1} parent=1 // loop_header_branch
      %16 = sbr.rel (%p14) target = $region8
    $region5: #{tpu_custom_call.1} parent=1 // loop_body
      %s18 = ssub.s32 %s13, 1
      %s19 = ssub.s32 %s13, 2
      %s20 = sadd.s32 %s13, 1
      %s21 = ssub.s32 %s13, %s20
      %p22 = scmp.eq.s32.totalorder %s21, 0
      %s24 = sadd.s32 %s23, 1
      %s25 = scalar_select %p22, %s23, %s24
      %p28 = pneg %p22
      %p29 = scmp.eq.s32.totalorder %s13, 1
      %p30 = por %p28, %p29
      %p31 = scmp.ne.s32.totalorder %s23, %s26
      %p32 = scmp.eq.s32.totalorder %s13, 0
      %p33 = por %p31, %p32
      %p34 = scmp.ne.s32.totalorder %s23, %s26
      %p35 = scmp.eq.s32.totalorder %s18, 1
      %p36 = por %p34, %p35
      %p37 = scmp.ne.s32.totalorder %s26, %s27
      %p38 = scmp.eq.s32.totalorder %s18, 0
      %p39 = por %p37, %p38
      %p40 = scmp.ne.s32.totalorder %s26, %s27
      %p41 = scmp.eq.s32.totalorder %s19, 1
      %p42 = por %p40, %p41
      %p44 = scmp.ne.s32.totalorder %s27, %s43
      %p45 = scmp.eq.s32.totalorder %s19, 0
      %p46 = por %p44, %p45
      %s48 = sadd.s32 %s47, 1
      %p51 = scmp.eq.s32.totalorder %s13, 1
      %p52 = scmp.ne.s32.totalorder %s47, %s49
      %p53 = scmp.eq.s32.totalorder %s13, 0
      %p54 = por %p52, %p53
      %p55 = scmp.ne.s32.totalorder %s47, %s49
      %p56 = scmp.eq.s32.totalorder %s18, 1
      %p57 = por %p55, %p56
      %p58 = scmp.ne.s32.totalorder %s49, %s50
      %p59 = scmp.eq.s32.totalorder %s18, 0
      %p60 = por %p58, %p59
      %p61 = scmp.ne.s32.totalorder %s49, %s50
      %p62 = scmp.eq.s32.totalorder %s19, 1
      %p63 = por %p61, %p62
      %p65 = scmp.ne.s32.totalorder %s50, %s64
      %p66 = scmp.eq.s32.totalorder %s19, 0
      %p67 = por %p65, %p66
      %s69 = sadd.s32 %s68, 1
      %p72 = scmp.eq.s32.totalorder %s13, 1
      %p73 = scmp.ne.s32.totalorder %s68, %s70
      %p74 = scmp.eq.s32.totalorder %s13, 0
      %p75 = por %p73, %p74
      %p76 = scmp.ne.s32.totalorder %s68, %s70
      %p77 = scmp.eq.s32.totalorder %s18, 1
      %p78 = por %p76, %p77
      %p79 = scmp.ne.s32.totalorder %s70, %s71
      %p80 = scmp.eq.s32.totalorder %s18, 0
      %p81 = por %p79, %p80
      %p82 = scmp.ne.s32.totalorder %s70, %s71
      %p83 = scmp.eq.s32.totalorder %s19, 1
      %p84 = por %p82, %p83
      %p86 = scmp.ne.s32.totalorder %s71, %s85
      %p87 = scmp.eq.s32.totalorder %s19, 0
      %p88 = por %p86, %p87
      %s90 = sadd.s32 %s89, 1
      %p93 = scmp.eq.s32.totalorder %s13, 1
      %p94 = scmp.ne.s32.totalorder %s89, %s91
      %p95 = scmp.eq.s32.totalorder %s13, 0
      %p96 = por %p94, %p95
      %p97 = scmp.ne.s32.totalorder %s89, %s91
      %p98 = scmp.eq.s32.totalorder %s18, 1
      %p99 = por %p97, %p98
      %p100 = scmp.ne.s32.totalorder %s91, %s92
      %p101 = scmp.eq.s32.totalorder %s18, 0
      %p102 = por %p100, %p101
      %p103 = scmp.ne.s32.totalorder %s91, %s92
      %p104 = scmp.eq.s32.totalorder %s19, 1
      %p105 = por %p103, %p104
      %p107 = scmp.ne.s32.totalorder %s92, %s106
      %p108 = scmp.eq.s32.totalorder %s19, 0
      %p109 = por %p107, %p108
      %s110 = ssub.s32 %s13, %s20
      %p111 = scmp.eq.s32.totalorder %s110, 0
      %s113 = sadd.s32 %s112, 1
      %s114 = scalar_select %p111, %s112, %s113
      %p117 = pneg %p111
      %p118 = scmp.eq.s32.totalorder %s13, 1
      %p119 = por %p117, %p118
      %p120 = scmp.ne.s32.totalorder %s112, %s115
      %p121 = scmp.eq.s32.totalorder %s13, 0
      %p122 = por %p120, %p121
      %p123 = scmp.ne.s32.totalorder %s112, %s115
      %p124 = scmp.eq.s32.totalorder %s18, 1
      %p125 = por %p123, %p124
      %p126 = scmp.ne.s32.totalorder %s115, %s116
      %p127 = scmp.eq.s32.totalorder %s18, 0
      %p128 = por %p126, %p127
      %p129 = scmp.ne.s32.totalorder %s115, %s116
      %p130 = scmp.eq.s32.totalorder %s19, 1
      %p131 = por %p129, %p130
      %p133 = scmp.ne.s32.totalorder %s116, %s132
      %p134 = scmp.eq.s32.totalorder %s19, 0
      %p135 = por %p133, %p134
      %p136 = scmp.le.s32.totalorder 1, %s13
      %p137 = scmp.lt.s32.totalorder %s13, 3
      %p138 = pnand %p136, %p137
      %p139 = pneg %p138
      // Predicated region
      $region9: #{tpu_custom_call.1} parent=5 // pred_check
        _
      $region10: #{tpu_custom_call.1} parent=5 // pred_check_branch
        %141 = sbr.rel (%p138) target = $region12
      $region11: #{tpu_custom_call.1} parent=5 // pred_region
        %s142 = ssub.s32 %s13, 1
        // Predicated region
        $region13: #{tpu_custom_call.1} parent=11 // pred_check
          %p143 = pneg %p60
        $region14: #{tpu_custom_call.1} parent=11 // pred_check_branch
          %145 = sbr.rel (%p143) target = $region16
        $region15: #{tpu_custom_call.1} parent=11 // pred_region
          _
        $region16: #{tpu_custom_call.1} parent=11 // pred_fallthru
          _
        // Predicated region
        $region17: #{tpu_custom_call.1} parent=11 // pred_check
          %p146 = pneg %p81
        $region18: #{tpu_custom_call.1} parent=11 // pred_check_branch
          %148 = sbr.rel (%p146) target = $region20
        $region19: #{tpu_custom_call.1} parent=11 // pred_region
          _
        $region20: #{tpu_custom_call.1} parent=11 // pred_fallthru
          _
        // Predicated region
        $region21: #{tpu_custom_call.1} parent=11 // pred_check
          %p149 = pneg %p102
        $region22: #{tpu_custom_call.1} parent=11 // pred_check_branch
          %151 = sbr.rel (%p149) target = $region24
        $region23: #{tpu_custom_call.1} parent=11 // pred_region
          _
        $region24: #{tpu_custom_call.1} parent=11 // pred_fallthru
          _
      $region12: #{tpu_custom_call.1} parent=5 // pred_fallthru
        _
      %p152 = scmp.lt.s32.totalorder %s13, 2
      // Predicated region
      $region25: #{tpu_custom_call.1} parent=5 // pred_check
        %p153 = pneg %p152
      $region26: #{tpu_custom_call.1} parent=5 // pred_check_branch
        %155 = sbr.rel (%p153) target = $region28
      $region27: #{tpu_custom_call.1} parent=5 // pred_region
        // Predicated region
        $region29: #{tpu_custom_call.1} parent=27 // pred_check
          %p156 = pneg %p33
        $region30: #{tpu_custom_call.1} parent=27 // pred_check_branch
          %158 = sbr.rel (%p156) target = $region32
        $region31: #{tpu_custom_call.1} parent=27 // pred_region
          %s159 = sand.u32 %s23, 1
          %s160 = scalar_lea.sflag [#allocation3], %s159
          %s161 = sand.u32 %s23, 1
          %s162 = smul.addr %s161, 128
          %s163 = scalar_lea.vmem [#allocation2], %s162
          %s164 = smul.u32 16, %s13
          %s166 = ssub.s32 2048, 2048
          %167 = vsyncadd %s160, %s166
          %s168 = smul.addr %s164, 2
          %s169 = smul.addr %s168, 64
          %s170 = scalar_lea.hbm %s0, %s169
          %s171 = sshll.u32 %s163, 4
          %s172 = int_to_ptr.vmem [resolvable:$true] %s171
          %177 = dma.hbm_to_vmem [thread:$0]  %s170, 2048, %s172, %s160, 128, 128, 8
        $region32: #{tpu_custom_call.1} parent=27 // pred_fallthru
          _
      $region28: #{tpu_custom_call.1} parent=5 // pred_fallthru
        _
      %p178 = scmp.le.s32.totalorder 1, %s13
      %p179 = scmp.lt.s32.totalorder %s13, 3
      %p180 = pnand %p178, %p179
      %p181 = pneg %p180
      // Predicated region
      $region33: #{tpu_custom_call.1} parent=5 // pred_check
        _
      $region34: #{tpu_custom_call.1} parent=5 // pred_check_branch
        %183 = sbr.rel (%p180) target = $region36
      $region35: #{tpu_custom_call.1} parent=5 // pred_region
        %s184 = ssub.s32 %s13, 1
        %s185 = sand.u32 %s26, 1
        %s186 = scalar_lea.sflag [#allocation3], %s185
        %s187 = sand.u32 %s26, 1
        %s188 = smul.addr %s187, 128
        %s189 = scalar_lea.vmem [#allocation2], %s188
        // Predicated region
        $region37: #{tpu_custom_call.1} parent=35 // pred_check
          %p190 = pneg %p39
        $region38: #{tpu_custom_call.1} parent=35 // pred_check_branch
          %192 = sbr.rel (%p190) target = $region40
        $region39: #{tpu_custom_call.1} parent=35 // pred_region
          %193 = dma.done %s186, 2048
        $region40: #{tpu_custom_call.1} parent=35 // pred_fallthru
          _
        %s194 = sand.u32 %s26, 1
        %s195 = scalar_lea.sflag [#allocation3], %s194
        %s196 = sand.u32 %s26, 1
        %s197 = smul.addr %s196, 128
        %s198 = scalar_lea.vmem [#allocation2], %s197
        %p199 = pneg %p39
        %p200 = pneg %p36
        %p201 = pneg %p60
        %p202 = pneg %p57
        %p203 = pneg %p81
        %p204 = pneg %p78
        %p205 = pneg %p102
        %p206 = pneg %p99
        %p207 = pneg %p128
        %p208 = pneg %p125
        %s209 = smul.u32 16, %s18
        %p210 = scmp.lt.s32.totalorder %s209, 31
        %s211 = scalar_select %p210, %s209, 31
        %s212 = smul.addr %s211, 4
        %s213 = scalar_lea.vmem %s4, %s212
        %s214 = smul.u32 16, %s18
        %s215 = smul.u32 16, %s18
        %p216 = scmp.lt.s32.totalorder %s215, 31
        %s217 = scalar_select %p216, %s215, 31
        %s218 = smul.addr %s217, 4
        %s219 = scalar_lea.vmem %s4, %s218
        %s220 = smul.u32 16, %s18
        %v222 = vld [vmem:[%s1] sm:$0xf]
        %v223 = vld [vmem:[%s1 + $0x4] sm:$0xf]
        %v224 = vld [vmem:[%s1 + $0x8] sm:$0xf]
        %v225 = vld [vmem:[%s1 + $0xc] sm:$0xf]
        %v226 = vld [vmem:[%s1 + $0x10] sm:$0xf]
        %v227 = vld [vmem:[%s1 + $0x14] sm:$0xf]
        %v228 = vld [vmem:[%s1 + $0x18] sm:$0xf]
        %v229 = vld [vmem:[%s1 + $0x1c] sm:$0xf]
        %v230 = vld [vmem:[%s1 + $0x20] sm:$0xf]
        %v231 = vld [vmem:[%s1 + $0x24] sm:$0xf]
        %v232 = vld [vmem:[%s1 + $0x28] sm:$0xf]
        %v233 = vld [vmem:[%s1 + $0x2c] sm:$0xf]
        %v234 = vld [vmem:[%s1 + $0x30] sm:$0xf]
        %v235 = vld [vmem:[%s1 + $0x34] sm:$0xf]
        %v236 = vld [vmem:[%s1 + $0x38] sm:$0xf]
        %v237 = vld [vmem:[%s1 + $0x3c] sm:$0xf]
        %v238 = vld [vmem:[%s1 + $0x40] sm:$0xf]
        %v239 = vld [vmem:[%s1 + $0x44] sm:$0xf]
        %v240 = vld [vmem:[%s1 + $0x48] sm:$0xf]
        %v241 = vld [vmem:[%s1 + $0x4c] sm:$0xf]
        %v242 = vld [vmem:[%s1 + $0x50] sm:$0xf]
        %v243 = vld [vmem:[%s1 + $0x54] sm:$0xf]
        %v244 = vld [vmem:[%s1 + $0x58] sm:$0xf]
        %v245 = vld [vmem:[%s1 + $0x5c] sm:$0xf]
        %v246 = vld [vmem:[%s1 + $0x60] sm:$0xf]
        %v247 = vld [vmem:[%s1 + $0x64] sm:$0xf]
        %v248 = vld [vmem:[%s1 + $0x68] sm:$0xf]
        %v249 = vld [vmem:[%s1 + $0x6c] sm:$0xf]
        %v250 = vld [vmem:[%s1 + $0x70] sm:$0xf]
        %v251 = vld [vmem:[%s1 + $0x74] sm:$0xf]
        %v252 = vld [vmem:[%s1 + $0x78] sm:$0xf]
        %v253 = vld [vmem:[%s1 + $0x7c] sm:$0xf]
        %v254 = vld [vmem:[%s2] sm:$0xf]
        %v287 = vunpack.c.l.b16 %v222
        %v288 = vunpack.c.l.b16 %v223
        %v289 = vunpack.c.l.b16 %v224
        %v290 = vunpack.c.l.b16 %v225
        %v291 = vunpack.c.l.b16 %v226
        %v292 = vunpack.c.l.b16 %v227
        %v293 = vunpack.c.l.b16 %v228
        %v294 = vunpack.c.l.b16 %v229
        %v295 = vunpack.c.l.b16 %v230
        %v296 = vunpack.c.l.b16 %v231
        %v297 = vunpack.c.l.b16 %v232
        %v298 = vunpack.c.l.b16 %v233
        %v299 = vunpack.c.l.b16 %v234
        %v300 = vunpack.c.l.b16 %v235
        %v301 = vunpack.c.l.b16 %v236
        %v302 = vunpack.c.l.b16 %v237
        %v303 = vunpack.c.l.b16 %v238
        %v304 = vunpack.c.l.b16 %v239
        %v305 = vunpack.c.l.b16 %v240
        %v306 = vunpack.c.l.b16 %v241
        %v307 = vunpack.c.l.b16 %v242
        %v308 = vunpack.c.l.b16 %v243
        %v309 = vunpack.c.l.b16 %v244
        %v310 = vunpack.c.l.b16 %v245
        %v311 = vunpack.c.l.b16 %v246
        %v312 = vunpack.c.l.b16 %v247
        %v313 = vunpack.c.l.b16 %v248
        %v314 = vunpack.c.l.b16 %v249
        %v315 = vunpack.c.l.b16 %v250
        %v316 = vunpack.c.l.b16 %v251
        %v317 = vunpack.c.l.b16 %v252
        %v318 = vunpack.c.l.b16 %v253
        %v319 = vpack.c.b16 %v288, %v287
        %v320 = vpack.c.b16 %v290, %v289
        %v321 = vpack.c.b16 %v292, %v291
        %v322 = vpack.c.b16 %v294, %v293
        %v323 = vpack.c.b16 %v296, %v295
        %v324 = vpack.c.b16 %v298, %v297
        %v325 = vpack.c.b16 %v300, %v299
        %v326 = vpack.c.b16 %v302, %v301
        %v327 = vpack.c.b16 %v304, %v303
        %v328 = vpack.c.b16 %v306, %v305
        %v329 = vpack.c.b16 %v308, %v307
        %v330 = vpack.c.b16 %v310, %v309
        %v331 = vpack.c.b16 %v312, %v311
        %v332 = vpack.c.b16 %v314, %v313
        %v333 = vpack.c.b16 %v316, %v315
        %v334 = vpack.c.b16 %v318, %v317
        %vm335 = vcmask 64512
        %v337 = vsel %vm335, %v319, 0
        %v340 = vsel %vm335, %v320, 0
        %v343 = vsel %vm335, %v321, 0
        %v346 = vsel %vm335, %v322, 0
        %v349 = vsel %vm335, %v323, 0
        %v352 = vsel %vm335, %v324, 0
        %v355 = vsel %vm335, %v325, 0
        %v358 = vsel %vm335, %v326, 0
        %v361 = vsel %vm335, %v327, 0
        %v364 = vsel %vm335, %v328, 0
        %v367 = vsel %vm335, %v329, 0
        %v370 = vsel %vm335, %v330, 0
        %v373 = vsel %vm335, %v331, 0
        %v376 = vsel %vm335, %v332, 0
        %v379 = vsel %vm335, %v333, 0
        %v382 = vsel %vm335, %v334, 0
        %vm384 = vcmask 1043456
        %v386 = vsel %vm384, %v254, 0
        %388 = vmatprep.subr.bf16.mxu0 0
        %389 = vmatpush1.bf16.msra.mxu0 %v386
        %390 = vmatprep.subr.bf16.mxu0 0
        %391 = vmatpush1.bf16.msra.mxu0 0
        %392 = vmatprep.subr.bf16.mxu0 0
        %393 = vmatpush1.bf16.msra.mxu0 0
        %394 = vmatprep.subr.bf16.mxu0 0
        %395 = vmatpush1.bf16.msra.mxu0 0
        %396 = vmatprep.subr.bf16.mxu0 0
        %397 = vmatpush1.bf16.msra.mxu0 0
        %398 = vmatprep.subr.bf16.mxu0 0
        %399 = vmatpush1.bf16.msra.mxu0 0
        %400 = vmatprep.subr.bf16.mxu0 0
        %401 = vmatpush1.bf16.msra.mxu0 0
        %402 = vmatprep.subr.bf16.mxu0 0
        %403 = vmatpush1.bf16.msra.mxu0 0
        %404 = vmatprep.subr.bf16.mxu0 0
        %405 = vmatpush1.bf16.msra.mxu0 0
        %406 = vmatprep.subr.bf16.mxu0 0
        %407 = vmatpush1.bf16.msra.mxu0 0
        %408 = vmatprep.subr.bf16.mxu0 0
        %409 = vmatpush1.bf16.msra.mxu0 0
        %410 = vmatprep.subr.bf16.mxu0 0
        %411 = vmatpush1.bf16.msra.mxu0 0
        %412 = vmatprep.subr.bf16.mxu0 0
        %413 = vmatpush1.bf16.msra.mxu0 0
        %414 = vmatprep.subr.bf16.mxu0 0
        %415 = vmatpush1.bf16.msra.mxu0 0
        %416 = vmatprep.subr.bf16.mxu0 0
        %417 = vmatpush1.bf16.msra.mxu0 0
        %418 = vmatprep.subr.bf16.mxu0 0
        %419 = vmatpush1.bf16.msra.mxu0 0
        %420 = vmatprep.mubr.bf16.mxu0 0
        %421 = vmatmul.mubr.bf16.gmra.mrb[0].mxu0 %v337
        %v422 = vpop.f32.mrb[0].mxu0
        %v423 = vadd.f32 0.0, %v422
        %v424 = vpop.f32.mrb[0].mxu0
        %v425 = vpop.f32.mrb[0].mxu0
        %v426 = vadd.f32 0.0, %v425
        %v427 = vpop.f32.mrb[0].mxu0
        %428 = vmatprep.mubr.bf16.mxu0 0
        %429 = vmatmul.mubr.bf16.gmra.mrb[0].mxu0 %v340
        %v430 = vpop.f32.mrb[0].mxu0
        %v431 = vadd.f32 0.0, %v430
        %v432 = vpop.f32.mrb[0].mxu0
        %v433 = vpop.f32.mrb[0].mxu0
        %v434 = vadd.f32 0.0, %v433
        %v435 = vpop.f32.mrb[0].mxu0
        %436 = vmatprep.mubr.bf16.mxu0 0
        %437 = vmatmul.mubr.bf16.gmra.mrb[0].mxu0 %v343
        %v438 = vpop.f32.mrb[0].mxu0
        %v439 = vadd.f32 0.0, %v438
        %v440 = vpop.f32.mrb[0].mxu0
        %v441 = vpop.f32.mrb[0].mxu0
        %v442 = vadd.f32 0.0, %v441
        %v443 = vpop.f32.mrb[0].mxu0
        %444 = vmatprep.mubr.bf16.mxu0 0
        %445 = vmatmul.mubr.bf16.gmra.mrb[0].mxu0 %v346
        %v446 = vpop.f32.mrb[0].mxu0
        %v447 = vadd.f32 0.0, %v446
        %v448 = vpop.f32.mrb[0].mxu0
        %v449 = vpop.f32.mrb[0].mxu0
        %v450 = vadd.f32 0.0, %v449
        %v451 = vpop.f32.mrb[0].mxu0
        %452 = vmatprep.mubr.bf16.mxu0 0
        %453 = vmatmul.mubr.bf16.gmra.mrb[0].mxu0 %v349
        %v454 = vpop.f32.mrb[0].mxu0
        %v455 = vadd.f32 0.0, %v454
        %v456 = vpop.f32.mrb[0].mxu0
        %v457 = vpop.f32.mrb[0].mxu0
        %v458 = vadd.f32 0.0, %v457
        %v459 = vpop.f32.mrb[0].mxu0
        %460 = vmatprep.mubr.bf16.mxu0 0
        %461 = vmatmul.mubr.bf16.gmra.mrb[0].mxu0 %v352
        %v462 = vpop.f32.mrb[0].mxu0
        %v463 = vadd.f32 0.0, %v462
        %v464 = vpop.f32.mrb[0].mxu0
        %v465 = vpop.f32.mrb[0].mxu0
        %v466 = vadd.f32 0.0, %v465
        %v467 = vpop.f32.mrb[0].mxu0
        %468 = vmatprep.mubr.bf16.mxu0 0
        %469 = vmatmul.mubr.bf16.gmra.mrb[0].mxu0 %v355
        %v470 = vpop.f32.mrb[0].mxu0
        %v471 = vadd.f32 0.0, %v470
        %v472 = vpop.f32.mrb[0].mxu0
        %v473 = vpop.f32.mrb[0].mxu0
        %v474 = vadd.f32 0.0, %v473
        %v475 = vpop.f32.mrb[0].mxu0
        %476 = vmatprep.mubr.bf16.mxu0 0
        %477 = vmatmul.mubr.bf16.gmra.mrb[0].mxu0 %v358
        %v478 = vpop.f32.mrb[0].mxu0
        %v479 = vadd.f32 0.0, %v478
        %v480 = vpop.f32.mrb[0].mxu0
        %v481 = vpop.f32.mrb[0].mxu0
        %v482 = vadd.f32 0.0, %v481
        %v483 = vpop.f32.mrb[0].mxu0
        %484 = vmatprep.mubr.bf16.mxu0 0
        %485 = vmatmul.mubr.bf16.gmra.mrb[0].mxu0 %v361
        %v486 = vpop.f32.mrb[0].mxu0
        %v487 = vadd.f32 0.0, %v486
        %v488 = vpop.f32.mrb[0].mxu0
        %v489 = vpop.f32.mrb[0].mxu0
        %v490 = vadd.f32 0.0, %v489
        %v491 = vpop.f32.mrb[0].mxu0
        %492 = vmatprep.mubr.bf16.mxu0 0
        %493 = vmatmul.mubr.bf16.gmra.mrb[0].mxu0 %v364
        %v494 = vpop.f32.mrb[0].mxu0
        %v495 = vadd.f32 0.0, %v494
        %v496 = vpop.f32.mrb[0].mxu0
        %v497 = vpop.f32.mrb[0].mxu0
        %v498 = vadd.f32 0.0, %v497
        %v499 = vpop.f32.mrb[0].mxu0
        %500 = vmatprep.mubr.bf16.mxu0 0
        %501 = vmatmul.mubr.bf16.gmra.mrb[0].mxu0 %v367
        %v502 = vpop.f32.mrb[0].mxu0
        %v503 = vadd.f32 0.0, %v502
        %v504 = vpop.f32.mrb[0].mxu0
        %v505 = vpop.f32.mrb[0].mxu0
        %v506 = vadd.f32 0.0, %v505
        %v507 = vpop.f32.mrb[0].mxu0
        %508 = vmatprep.mubr.bf16.mxu0 0
        %509 = vmatmul.mubr.bf16.gmra.mrb[0].mxu0 %v370
        %v510 = vpop.f32.mrb[0].mxu0
        %v511 = vadd.f32 0.0, %v510
        %v512 = vpop.f32.mrb[0].mxu0
        %v513 = vpop.f32.mrb[0].mxu0
        %v514 = vadd.f32 0.0, %v513
        %v515 = vpop.f32.mrb[0].mxu0
        %516 = vmatprep.mubr.bf16.mxu0 0
        %517 = vmatmul.mubr.bf16.gmra.mrb[0].mxu0 %v373
        %v518 = vpop.f32.mrb[0].mxu0
        %v519 = vadd.f32 0.0, %v518
        %v520 = vpop.f32.mrb[0].mxu0
        %v521 = vpop.f32.mrb[0].mxu0
        %v522 = vadd.f32 0.0, %v521
        %v523 = vpop.f32.mrb[0].mxu0
        %524 = vmatprep.mubr.bf16.mxu0 0
        %525 = vmatmul.mubr.bf16.gmra.mrb[0].mxu0 %v376
        %v526 = vpop.f32.mrb[0].mxu0
        %v527 = vadd.f32 0.0, %v526
        %v528 = vpop.f32.mrb[0].mxu0
        %v529 = vpop.f32.mrb[0].mxu0
        %v530 = vadd.f32 0.0, %v529
        %v531 = vpop.f32.mrb[0].mxu0
        %532 = vmatprep.mubr.bf16.mxu0 0
        %533 = vmatmul.mubr.bf16.gmra.mrb[0].mxu0 %v379
        %v534 = vpop.f32.mrb[0].mxu0
        %v535 = vadd.f32 0.0, %v534
        %v536 = vpop.f32.mrb[0].mxu0
        %v537 = vpop.f32.mrb[0].mxu0
        %v538 = vadd.f32 0.0, %v537
        %v539 = vpop.f32.mrb[0].mxu0
        %540 = vmatprep.mubr.bf16.mxu0 0
        %541 = vmatmul.mubr.bf16.gmra.mrb[0].mxu0 %v382
        %v542 = vpop.f32.mrb[0].mxu0
        %v543 = vadd.f32 0.0, %v542
        %v544 = vpop.f32.mrb[0].mxu0
        %v545 = vpop.f32.mrb[0].mxu0
        %v546 = vadd.f32 0.0, %v545
        %v547 = vpop.f32.mrb[0].mxu0
        %548 = vdwg.mxu0
        %v549 = vld [vmem:[%s189] sm:$0xff]
        %v550 = vld [vmem:[%s189 + $0x8] sm:$0xff]
        %v551 = vld [vmem:[%s189 + $0x10] sm:$0xff]
        %v552 = vld [vmem:[%s189 + $0x18] sm:$0xff]
        %v553 = vld [vmem:[%s189 + $0x20] sm:$0xff]
        %v554 = vld [vmem:[%s189 + $0x28] sm:$0xff]
        %v555 = vld [vmem:[%s189 + $0x30] sm:$0xff]
        %v556 = vld [vmem:[%s189 + $0x38] sm:$0xff]
        %v557 = vld [vmem:[%s189 + $0x40] sm:$0xff]
        %v558 = vld [vmem:[%s189 + $0x48] sm:$0xff]
        %v559 = vld [vmem:[%s189 + $0x50] sm:$0xff]
        %v560 = vld [vmem:[%s189 + $0x58] sm:$0xff]
        %v561 = vld [vmem:[%s189 + $0x60] sm:$0xff]
        %v562 = vld [vmem:[%s189 + $0x68] sm:$0xff]
        %v563 = vld [vmem:[%s189 + $0x70] sm:$0xff]
        %v564 = vld [vmem:[%s189 + $0x78] sm:$0xff]
        %v565 = vpack.c.bf16 %v426, %v423
        %v566 = vpack.c.bf16 %v434, %v431
        %v567 = vpack.c.bf16 %v442, %v439
        %v568 = vpack.c.bf16 %v450, %v447
        %v569 = vpack.c.bf16 %v458, %v455
        %v570 = vpack.c.bf16 %v466, %v463
        %v571 = vpack.c.bf16 %v474, %v471
        %v572 = vpack.c.bf16 %v482, %v479
        %v573 = vpack.c.bf16 %v490, %v487
        %v574 = vpack.c.bf16 %v498, %v495
        %v575 = vpack.c.bf16 %v506, %v503
        %v576 = vpack.c.bf16 %v514, %v511
        %v577 = vpack.c.bf16 %v522, %v519
        %v578 = vpack.c.bf16 %v530, %v527
        %v579 = vpack.c.bf16 %v538, %v535
        %v580 = vpack.c.bf16 %v546, %v543
        %v581 = vld [vmem:[%s3] sm:$0x1]
        %v583 = vlaneseq
        %v584 = vshrl.u32 %v583, 7
        %v585 = vsub.s32 0, %v584
        %v586 = vrot.slane %v581, %v585
        %v604 = vunpack.c.l.b16 %v549
        %v605 = vunpack.c.h.b16 %v549
        %v606 = vunpack.c.l.b16 %v550
        %v607 = vunpack.c.h.b16 %v550
        %v608 = vunpack.c.l.b16 %v551
        %v609 = vunpack.c.h.b16 %v551
        %v610 = vunpack.c.l.b16 %v552
        %v611 = vunpack.c.h.b16 %v552
        %v612 = vunpack.c.l.b16 %v553
        %v613 = vunpack.c.h.b16 %v553
        %v614 = vunpack.c.l.b16 %v554
        %v615 = vunpack.c.h.b16 %v554
        %v616 = vunpack.c.l.b16 %v555
        %v617 = vunpack.c.h.b16 %v555
        %v618 = vunpack.c.l.b16 %v556
        %v619 = vunpack.c.h.b16 %v556
        %v620 = vunpack.c.l.b16 %v557
        %v621 = vunpack.c.h.b16 %v557
        %v622 = vunpack.c.l.b16 %v558
        %v623 = vunpack.c.h.b16 %v558
        %v624 = vunpack.c.l.b16 %v559
        %v625 = vunpack.c.h.b16 %v559
        %v626 = vunpack.c.l.b16 %v560
        %v627 = vunpack.c.h.b16 %v560
        %v628 = vunpack.c.l.b16 %v561
        %v629 = vunpack.c.h.b16 %v561
        %v630 = vunpack.c.l.b16 %v562
        %v631 = vunpack.c.h.b16 %v562
        %v632 = vunpack.c.l.b16 %v563
        %v633 = vunpack.c.h.b16 %v563
        %v634 = vunpack.c.l.b16 %v564
        %v635 = vunpack.c.h.b16 %v564
        %v636 = vpack.c.b16 %v606, %v604
        %v637 = vpack.c.b16 %v607, %v605
        %v638 = vpack.c.b16 %v610, %v608
        %v639 = vpack.c.b16 %v611, %v609
        %v640 = vpack.c.b16 %v614, %v612
        %v641 = vpack.c.b16 %v615, %v613
        %v642 = vpack.c.b16 %v618, %v616
        %v643 = vpack.c.b16 %v619, %v617
        %v644 = vpack.c.b16 %v622, %v620
        %v645 = vpack.c.b16 %v623, %v621
        %v646 = vpack.c.b16 %v626, %v624
        %v647 = vpack.c.b16 %v627, %v625
        %v648 = vpack.c.b16 %v630, %v628
        %v649 = vpack.c.b16 %v631, %v629
        %v650 = vpack.c.b16 %v634, %v632
        %v651 = vpack.c.b16 %v635, %v633
        %668 = vmatprep.subr.bf16.mxu0 0
        %669 = vmatpush1.bf16.msra.mxu0 %v565
        %670 = vmatprep.subr.bf16.mxu0 0
        %671 = vmatpush1.bf16.msra.mxu0 %v566
        %672 = vmatprep.subr.bf16.mxu0 0
        %673 = vmatpush1.bf16.msra.mxu0 %v567
        %674 = vmatprep.subr.bf16.mxu0 0
        %675 = vmatpush1.bf16.msra.mxu0 %v568
        %676 = vmatprep.subr.bf16.mxu0 0
        %677 = vmatpush1.bf16.msra.mxu0 %v569
        %678 = vmatprep.subr.bf16.mxu0 0
        %679 = vmatpush1.bf16.msra.mxu0 %v570
        %680 = vmatprep.subr.bf16.mxu0 0
        %681 = vmatpush1.bf16.msra.mxu0 %v571
        %682 = vmatprep.subr.bf16.mxu0 0
        %683 = vmatpush1.bf16.msra.mxu0 %v572
        %684 = vmatprep.subr.bf16.mxu0 0
        %685 = vmatpush1.bf16.msra.mxu0 %v573
        %686 = vmatprep.subr.bf16.mxu0 0
        %687 = vmatpush1.bf16.msra.mxu0 %v574
        %688 = vmatprep.subr.bf16.mxu0 0
        %689 = vmatpush1.bf16.msra.mxu0 %v575
        %690 = vmatprep.subr.bf16.mxu0 0
        %691 = vmatpush1.bf16.msra.mxu0 %v576
        %692 = vmatprep.subr.bf16.mxu0 0
        %693 = vmatpush1.bf16.msra.mxu0 %v577
        %694 = vmatprep.subr.bf16.mxu0 0
        %695 = vmatpush1.bf16.msra.mxu0 %v578
        %696 = vmatprep.subr.bf16.mxu0 0
        %697 = vmatpush1.bf16.msra.mxu0 %v579
        %698 = vmatprep.subr.bf16.mxu0 0
        %699 = vmatpush1.bf16.msra.mxu0 %v580
        %700 = vmatprep.mubr.bf16.mxu0 %v637
        %701 = vmatmul.mubr.bf16.gmra.mrb[0].mxu0 %v636
        %v702 = vpop.f32.mrb[0].mxu0
        %v703 = vadd.f32 %v586, %v702
        %v704 = vpop.f32.mrb[0].mxu0
        %v705 = vpop.f32.mrb[0].mxu0
        %v706 = vadd.f32 %v586, %v705
        %v707 = vpop.f32.mrb[0].mxu0
        %708 = vmatprep.mubr.bf16.mxu0 %v639
        %709 = vmatmul.mubr.bf16.gmra.mrb[0].mxu0 %v638
        %v710 = vpop.f32.mrb[0].mxu0
        %v711 = vadd.f32 %v586, %v710
        %v712 = vpop.f32.mrb[0].mxu0
        %v713 = vpop.f32.mrb[0].mxu0
        %v714 = vadd.f32 %v586, %v713
        %v715 = vpop.f32.mrb[0].mxu0
        %716 = vmatprep.mubr.bf16.mxu0 %v641
        %717 = vmatmul.mubr.bf16.gmra.mrb[0].mxu0 %v640
        %v718 = vpop.f32.mrb[0].mxu0
        %v719 = vadd.f32 %v586, %v718
        %v720 = vpop.f32.mrb[0].mxu0
        %v721 = vpop.f32.mrb[0].mxu0
        %v722 = vadd.f32 %v586, %v721
        %v723 = vpop.f32.mrb[0].mxu0
        %724 = vmatprep.mubr.bf16.mxu0 %v643
        %725 = vmatmul.mubr.bf16.gmra.mrb[0].mxu0 %v642
        %v726 = vpop.f32.mrb[0].mxu0
        %v727 = vadd.f32 %v586, %v726
        %v728 = vpop.f32.mrb[0].mxu0
        %v729 = vpop.f32.mrb[0].mxu0
        %v730 = vadd.f32 %v586, %v729
        %v731 = vpop.f32.mrb[0].mxu0
        %732 = vmatprep.mubr.bf16.mxu0 %v645
        %733 = vmatmul.mubr.bf16.gmra.mrb[0].mxu0 %v644
        %v734 = vpop.f32.mrb[0].mxu0
        %v735 = vadd.f32 %v586, %v734
        %v736 = vpop.f32.mrb[0].mxu0
        %v737 = vpop.f32.mrb[0].mxu0
        %v738 = vadd.f32 %v586, %v737
        %v739 = vpop.f32.mrb[0].mxu0
        %740 = vmatprep.mubr.bf16.mxu0 %v647
        %741 = vmatmul.mubr.bf16.gmra.mrb[0].mxu0 %v646
        %v742 = vpop.f32.mrb[0].mxu0
        %v743 = vadd.f32 %v586, %v742
        %v744 = vpop.f32.mrb[0].mxu0
        %v745 = vpop.f32.mrb[0].mxu0
        %v746 = vadd.f32 %v586, %v745
        %v747 = vpop.f32.mrb[0].mxu0
        %748 = vmatprep.mubr.bf16.mxu0 %v649
        %749 = vmatmul.mubr.bf16.gmra.mrb[0].mxu0 %v648
        %v750 = vpop.f32.mrb[0].mxu0
        %v751 = vadd.f32 %v586, %v750
        %v752 = vpop.f32.mrb[0].mxu0
        %v753 = vpop.f32.mrb[0].mxu0
        %v754 = vadd.f32 %v586, %v753
        %v755 = vpop.f32.mrb[0].mxu0
        %756 = vmatprep.mubr.bf16.mxu0 %v651
        %757 = vmatmul.mubr.bf16.gmra.mrb[0].mxu0 %v650
        %v758 = vpop.f32.mrb[0].mxu0
        %v759 = vadd.f32 %v586, %v758
        %v760 = vpop.f32.mrb[0].mxu0
        %v761 = vpop.f32.mrb[0].mxu0
        %v762 = vadd.f32 %v586, %v761
        %v763 = vpop.f32.mrb[0].mxu0
        %764 = vdwg.mxu0
        %v765 = vmax.f32 %v703, 0.0
        %v766 = vmax.f32 %v706, 0.0
        %v767 = vmax.f32 %v711, 0.0
        %v768 = vmax.f32 %v714, 0.0
        %v769 = vmax.f32 %v719, 0.0
        %v770 = vmax.f32 %v722, 0.0
        %v771 = vmax.f32 %v727, 0.0
        %v772 = vmax.f32 %v730, 0.0
        %v773 = vmax.f32 %v735, 0.0
        %v774 = vmax.f32 %v738, 0.0
        %v775 = vmax.f32 %v743, 0.0
        %v776 = vmax.f32 %v746, 0.0
        %v777 = vmax.f32 %v751, 0.0
        %v778 = vmax.f32 %v754, 0.0
        %v779 = vmax.f32 %v759, 0.0
        %v780 = vmax.f32 %v762, 0.0
        %v781 = vpack.c.bf16 %v766, %v765
        %v782 = vpack.c.bf16 %v768, %v767
        %v783 = vpack.c.bf16 %v770, %v769
        %v784 = vpack.c.bf16 %v772, %v771
        %v785 = vpack.c.bf16 %v774, %v773
        %v786 = vpack.c.bf16 %v776, %v775
        %v787 = vpack.c.bf16 %v778, %v777
        %v788 = vpack.c.bf16 %v780, %v779
        %v797 = vunpack.c.l.b16 %v781
        %v798 = vunpack.c.h.b16 %v781
        %v799 = vunpack.c.l.b16 %v782
        %v800 = vunpack.c.h.b16 %v782
        %v801 = vunpack.c.l.b16 %v783
        %v802 = vunpack.c.h.b16 %v783
        %v803 = vunpack.c.l.b16 %v784
        %v804 = vunpack.c.h.b16 %v784
        %v805 = vunpack.c.l.b16 %v785
        %v806 = vunpack.c.h.b16 %v785
        %v807 = vunpack.c.l.b16 %v786
        %v808 = vunpack.c.h.b16 %v786
        %v809 = vunpack.c.l.b16 %v787
        %v810 = vunpack.c.h.b16 %v787
        %v811 = vunpack.c.l.b16 %v788
        %v812 = vunpack.c.h.b16 %v788
        %v813 = vpack.c.b16 %v797, %v797
        %v814 = vpack.c.b16 %v798, %v798
        %v815 = vpack.c.b16 %v799, %v799
        %v816 = vpack.c.b16 %v800, %v800
        %v817 = vpack.c.b16 %v801, %v801
        %v818 = vpack.c.b16 %v802, %v802
        %v819 = vpack.c.b16 %v803, %v803
        %v820 = vpack.c.b16 %v804, %v804
        %v821 = vpack.c.b16 %v805, %v805
        %v822 = vpack.c.b16 %v806, %v806
        %v823 = vpack.c.b16 %v807, %v807
        %v824 = vpack.c.b16 %v808, %v808
        %v825 = vpack.c.b16 %v809, %v809
        %v826 = vpack.c.b16 %v810, %v810
        %v827 = vpack.c.b16 %v811, %v811
        %v828 = vpack.c.b16 %v812, %v812
        %vm845 = vcmask 257024
        %846 = vst.msk [vmem:[%s219] sm:$0xf] %vm845, %v813
        %847 = vst.msk [vmem:[%s219 + $0x4] sm:$0xf] %vm845, %v814
        %848 = vst.msk [vmem:[%s219 + $0x8] sm:$0xf] %vm845, %v815
        %849 = vst.msk [vmem:[%s219 + $0xc] sm:$0xf] %vm845, %v816
        %850 = vst.msk [vmem:[%s219 + $0x10] sm:$0xf] %vm845, %v817
        %851 = vst.msk [vmem:[%s219 + $0x14] sm:$0xf] %vm845, %v818
        %852 = vst.msk [vmem:[%s219 + $0x18] sm:$0xf] %vm845, %v819
        %853 = vst.msk [vmem:[%s219 + $0x1c] sm:$0xf] %vm845, %v820
        %854 = vst.msk [vmem:[%s219 + $0x20] sm:$0xf] %vm845, %v821
        %855 = vst.msk [vmem:[%s219 + $0x24] sm:$0xf] %vm845, %v822
        %856 = vst.msk [vmem:[%s219 + $0x28] sm:$0xf] %vm845, %v823
        %857 = vst.msk [vmem:[%s219 + $0x2c] sm:$0xf] %vm845, %v824
        %858 = vst.msk [vmem:[%s219 + $0x30] sm:$0xf] %vm845, %v825
        %859 = vst.msk [vmem:[%s219 + $0x34] sm:$0xf] %vm845, %v826
        %860 = vst.msk [vmem:[%s219 + $0x38] sm:$0xf] %vm845, %v827
        %861 = vst.msk [vmem:[%s219 + $0x3c] sm:$0xf] %vm845, %v828
        %s862 = smul.u32 16, %s18
        %p863 = scmp.lt.s32.totalorder %s862, 31
        %s864 = scalar_select %p863, %s862, 31
        %s865 = smul.addr %s864, 4
        %s866 = scalar_lea.vmem %s4, %s865
        // Predicated region
        $region41: #{tpu_custom_call.1} parent=35 // pred_check
          %p867 = pneg %p125
        $region42: #{tpu_custom_call.1} parent=35 // pred_check_branch
          %869 = sbr.rel (%p867) target = $region44
        $region43: #{tpu_custom_call.1} parent=35 // pred_region
          %s870 = smul.u32 16, %s18
        $region44: #{tpu_custom_call.1} parent=35 // pred_fallthru
          _
      $region36: #{tpu_custom_call.1} parent=5 // pred_fallthru
        _
      %p871 = scmp.le.s32.totalorder 2, %s13
      // Predicated region
      $region45: #{tpu_custom_call.1} parent=5 // pred_check
        %p872 = pneg %p871
      $region46: #{tpu_custom_call.1} parent=5 // pred_check_branch
        %874 = sbr.rel (%p872) target = $region48
      $region47: #{tpu_custom_call.1} parent=5 // pred_region
        %s875 = ssub.s32 %s13, 2
        // Predicated region
        $region49: #{tpu_custom_call.1} parent=47 // pred_check
          %p876 = pneg %p131
        $region50: #{tpu_custom_call.1} parent=47 // pred_check_branch
          %878 = sbr.rel (%p876) target = $region52
        $region51: #{tpu_custom_call.1} parent=47 // pred_region
          %s879 = smul.u32 16, %s19
          %p880 = scmp.lt.s32.totalorder %s879, 31
          %s881 = scalar_select %p880, %s879, 31
          %s882 = smul.addr %s881, 4
          %s883 = scalar_lea.vmem %s4, %s882
        $region52: #{tpu_custom_call.1} parent=47 // pred_fallthru
          _
      $region48: #{tpu_custom_call.1} parent=5 // pred_fallthru
        _
    $region6: #{tpu_custom_call.1} parent=1 // loop_footer
      %s17 = sadd.s32 1, %s13
    $region7: #{tpu_custom_call.1} parent=1 // loop_footer_branch
      %12 = sbr.rel target = $region3
    $region8: #{tpu_custom_call.1} parent=1 // loop_exit
      _
    %884 = vsyncpa [#allocation3], 1
    %s885 = scalar_lea.sflag [#allocation3], 1
    %886 = vsyncpa %s885, 1

</llo_original>
